<compile_context>
chip_gen: v5e
topology: v5e:2x2
jax: 0.10.0
libtpu: 0.0.40
codegen_flags: <defaults>
</compile_context>

<pallas_src>
import math
import functools

import jax
import jax.numpy as jnp
from jax.experimental import pallas as pl
from jax.experimental.pallas import tpu as pltpu


def _num_tensorcores():
    """Best-effort TensorCore count per device (v5e/v6e: 1, v7x/v4/v5p: 2)."""
    try:
        kind = jax.devices()[0].device_kind.lower()
    except Exception:
        return 1
    if "v7" in kind or "v4" in kind or "v5p" in kind:
        return 2
    return 1


def _pick_bblk(batch, n, rows_target, num_tc):
    """Sets per grid step.

    Single-TC chips: the grid is a serial loop, so take the largest block that
    fits rows_target (down to a single step). 2-TC chips: keep >= num_tc steps
    and prefer a step count divisible by num_tc so both cores stay busy.
    Always respect the (8,128) sublane constraint and the in-kernel
    (rows,d) -> (bblk,n,d) leading-dim split.
    """
    candidates = [
        c for c in range(1, batch + 1)
        if batch % c == 0
        and ((c * n) % 8 == 0 or c == batch)   # block sublane constraint
        and (c == 1 or n % 8 == 0)             # safe in-kernel leading-dim split
    ]
    if not candidates:
        return 1
    if num_tc >= 2:
        pref = ([c for c in candidates if (batch // c) % num_tc == 0
                 and batch // c >= num_tc]
                or [c for c in candidates if batch // c >= num_tc]
                or candidates)
    else:
        pref = candidates
    fitting = [c for c in pref if c * n <= rows_target]
    return max(fitting) if fitting else min(pref)


def _sab_kernel(x_ref, wqkv_ref, bqkv_ref, wo_ref, bo_ref, o_ref, *scratch,
                num_heads, dim_v, bblk, n, flat_io):
    ds = dim_v // num_heads
    rows = bblk * n
    qkv_scr = scratch[0] if scratch else None

    x = (x_ref[...] if flat_io else x_ref[0]).astype(jnp.float32)   # (rows, d_in)

    # Fused QKV projection; the softmax scale is pre-folded into the K columns.
    qkv = jnp.dot(x, wqkv_ref[...], preferred_element_type=jnp.float32) + bqkv_ref[0]

    if qkv_scr is not None:
        # Large blocks: stage QKV in VMEM and slice per head from the scratch
        # so the live f32 set stays bounded (spills become scheduled loads).
        qkv_scr[...] = qkv

        def head_slices(h):
            lo = h * ds
            return (qkv_scr[:, lo:lo + ds],
                    qkv_scr[:, dim_v + lo:dim_v + lo + ds],
                    qkv_scr[:, 2 * dim_v + lo:2 * dim_v + lo + ds])
    else:
        def head_slices(h):
            lo = h * ds
            return (qkv[:, lo:lo + ds],
                    qkv[:, dim_v + lo:dim_v + lo + ds],
                    qkv[:, 2 * dim_v + lo:2 * dim_v + lo + ds])

    head_outs = []
    for h in range(num_heads):               # static unroll over (few) heads
        qh, kh, vh = head_slices(h)
        if bblk == 1:
            s = jax.lax.dot_general(qh, kh, (((1,), (1,)), ((), ())),
                                    preferred_element_type=jnp.float32)
            s = s - jnp.max(s, axis=-1, keepdims=True)
            p = jnp.exp(s)
            inv = pl.reciprocal(jnp.sum(p, axis=-1, keepdims=True), approx=True)
            av = jnp.dot(p, vh, preferred_element_type=jnp.float32) * inv
            head_outs.append(qh + av)
        else:
            # Leading-dim split only (n % 8 == 0 guaranteed by _pick_bblk).
            qh = qh.reshape(bblk, n, ds)
            kh = kh.reshape(bblk, n, ds)
            vh = vh.reshape(bblk, n, ds)
            s = jnp.einsum('bnd,bmd->bnm', qh, kh,
                           preferred_element_type=jnp.float32)
            s = s - jnp.max(s, axis=-1, keepdims=True)
            p = jnp.exp(s)
            inv = pl.reciprocal(jnp.sum(p, axis=-1, keepdims=True), approx=True)
            av = jnp.einsum('bnm,bmd->bnd', p, vh,
                            preferred_element_type=jnp.float32) * inv
            head_outs.append((qh + av).reshape(rows, ds))

    # Assemble heads in registers (single lane-dim concat inside one vreg;
    # no per-head 8-lane masked stores, no scratch round trip).
    o_att = jnp.concatenate(head_outs, axis=-1)                     # (rows, dV)
    fco = jnp.dot(o_att, wo_ref[...], preferred_element_type=jnp.float32) + bo_ref[0]
    out = (o_att + jnp.maximum(fco, 0.0)).astype(o_ref.dtype)

    if flat_io:
        o_ref[...] = out                      # exactly one full-width store
    else:
        o_ref[0] = out


def sab_forward(x, params, *, num_heads, rows_target=512):
    """x: (B, N, dim_in) float32.  params: weights as (in, out), biases (1, out)."""
    B, N, d_in = x.shape
    d_v = params["wq"].shape[1]
    assert d_v % num_heads == 0

    # Fuse Q/K/V projections; fold the softmax scale 1/sqrt(dV) into K only
    # (K appears only in Q.K^T; Q is reused unscaled in the residual).
    scale = 1.0 / math.sqrt(d_v)
    wqkv = jnp.concatenate(
        [params["wq"], params["wk"] * scale, params["wv"]], axis=1)
    bqkv = jnp.concatenate(
        [params["bq"], params["bk"] * scale, params["bv"]], axis=1)

    num_tc = _num_tensorcores()
    flat = (N % 8 == 0) or (B == 1)
    if flat:
        bblk = _pick_bblk(B, N, rows_target, num_tc)
        grid = (B // bblk,)
        x_in = x.reshape(B * N, d_in)
        x_spec = pl.BlockSpec((bblk * N, d_in), lambda b: (b, 0))
        out_shape = jax.ShapeDtypeStruct((B * N, d_v), jnp.float32)
        out_spec = pl.BlockSpec((bblk * N, d_v), lambda b: (b, 0))
    else:
        # Fallback for N not a multiple of 8: one set per step, 3-D full blocks.
        bblk = 1
        grid = (B,)
        x_in = x
        x_spec = pl.BlockSpec((1, N, d_in), lambda b: (b, 0, 0))
        out_shape = jax.ShapeDtypeStruct((B, N, d_v), jnp.float32)
        out_spec = pl.BlockSpec((1, N, d_v), lambda b: (b, 0, 0))

    rows = bblk * N
    stage_qkv = rows > 256
    scratch_shapes = ([pltpu.VMEM((rows, 3 * d_v), jnp.float32)]
                      if stage_qkv else [])

    kernel = functools.partial(_sab_kernel, num_heads=num_heads, dim_v=d_v,
                               bblk=bblk, n=N, flat_io=flat)
    w_map = lambda b: (0, 0)   # weights resident: DMA'd once, reused every step

    out = pl.pallas_call(
        kernel,
        out_shape=out_shape,
        grid_spec=pltpu.PrefetchScalarGridSpec(
            num_scalar_prefetch=0,
            grid=grid,
            in_specs=[
                x_spec,
                pl.BlockSpec((d_in, 3 * d_v), w_map),   # fused Wqkv (K pre-scaled)
                pl.BlockSpec((1, 3 * d_v), w_map),      # fused bqkv
                pl.BlockSpec((d_v, d_v), w_map),        # Wo
                pl.BlockSpec((1, d_v), w_map),          # bo
            ],
            out_specs=out_spec,
            scratch_shapes=scratch_shapes,
        ),
        compiler_params=pltpu.CompilerParams(
            dimension_semantics=("parallel",)),
    )(x_in, wqkv, bqkv, params["wo"], params["bo"])

    return out.reshape(B, N, d_v)


def sab_reference(x, params, *, num_heads):
    """Plain-JAX reference mirroring the PyTorch MAB.forward (ln=False)."""
    d_v = params["wq"].shape[1]
    ds = d_v // num_heads
    q = x @ params["wq"] + params["bq"][0]
    k = x @ params["wk"] + params["bk"][0]
    v = x @ params["wv"] + params["bv"][0]
    outs = []
    for h in range(num_heads):
        qh = q[..., h * ds:(h + 1) * ds]
        kh = k[..., h * ds:(h + 1) * ds]
        vh = v[..., h * ds:(h + 1) * ds]
        a = jax.nn.softmax(jnp.einsum("bnd,bmd->bnm", qh, kh) / math.sqrt(d_v), axis=-1)
        outs.append(qh + jnp.einsum("bnm,bmd->bnd", a, vh))
    o = jnp.concatenate(outs, axis=-1)
    return o + jax.nn.relu(o @ params["wo"] + params["bo"][0])


def init_params(key, dim_in, dim_out):
    """Deterministic synthetic params. Weights stored as (in, out) for x @ W."""
    ks = jax.random.split(key, 8)
    s_in = 1.0 / math.sqrt(dim_in)
    s_v = 1.0 / math.sqrt(dim_out)
    return {
        "wq": jax.random.uniform(ks[0], (dim_in, dim_out), jnp.float32, -s_in, s_in),
        "bq": jax.random.uniform(ks[1], (1, dim_out), jnp.float32, -s_in, s_in),
        "wk": jax.random.uniform(ks[2], (dim_in, dim_out), jnp.float32, -s_in, s_in),
        "bk": jax.random.uniform(ks[3], (1, dim_out), jnp.float32, -s_in, s_in),
        "wv": jax.random.uniform(ks[4], (dim_in, dim_out), jnp.float32, -s_in, s_in),
        "bv": jax.random.uniform(ks[5], (1, dim_out), jnp.float32, -s_in, s_in),
        "wo": jax.random.uniform(ks[6], (dim_out, dim_out), jnp.float32, -s_v, s_v),
        "bo": jax.random.uniform(ks[7], (1, dim_out), jnp.float32, -s_v, s_v),
    }


if __name__ == "__main__":
    key = jax.random.PRNGKey(0)
    k_x1, k_p1, k_x2, k_p2, k_x3, k_p3 = jax.random.split(key, 6)

    dim_in, dim_out, num_heads = 32, 32, 4
    TOL = dict(atol=5e-3, rtol=5e-3)   # loosened for approx EUP reciprocal

    # Case 1: small shapes (B=2, N=8).
    B, N = 2, 8
    x = jax.random.normal(k_x1, (B, N, dim_in), dtype=jnp.float32)
    params = init_params(k_p1, dim_in, dim_out)
    out = jax.block_until_ready(sab_forward(x, params, num_heads=num_heads))
    ref = sab_reference(x, params, num_heads=num_heads)
    assert out.shape == (B, N, dim_out)
    assert jnp.allclose(out, ref, **TOL), "case 1 mismatch vs JAX reference"

    # Case 2: multi-set-per-step (bblk > 1) batched path, register-resident QKV.
    B2, N2 = 8, 16
    x2 = jax.random.normal(k_x2, (B2, N2, dim_in), dtype=jnp.float32)
    params2 = init_params(k_p2, dim_in, dim_out)
    out2 = jax.block_until_ready(sab_forward(x2, params2, num_heads=num_heads))
    ref2 = sab_reference(x2, params2, num_heads=num_heads)
    assert out2.shape == (B2, N2, dim_out)
    assert jnp.allclose(out2, ref2, **TOL), "case 2 mismatch vs JAX reference"

    # Case 3: large block (rows > 256) -> VMEM-staged QKV path.
    B3, N3 = 64, 16
    x3 = jax.random.normal(k_x3, (B3, N3, dim_in), dtype=jnp.float32)
    params3 = init_params(k_p3, dim_in, dim_out)
    out3 = jax.block_until_ready(sab_forward(x3, params3, num_heads=num_heads))
    ref3 = sab_reference(x3, params3, num_heads=num_heads)
    assert out3.shape == (B3, N3, dim_out)
    assert jnp.allclose(out3, ref3, **TOL), "case 3 mismatch vs JAX reference"

    print("KERNEL_OK")
</pallas_src>

<mosaic_0001>
module attributes {stable_mosaic.version = 11 : i64} {
  func.func @_sab_kernel(%arg0: i32, %arg1: memref<16x32xf32, #tpu.memory_space<vmem>>, %arg2: memref<32x96xf32, #tpu.memory_space<vmem>>, %arg3: memref<1x96xf32, #tpu.memory_space<vmem>>, %arg4: memref<32x32xf32, #tpu.memory_space<vmem>>, %arg5: memref<1x32xf32, #tpu.memory_space<vmem>>, %arg6: memref<16x32xf32, #tpu.memory_space<vmem>>) attributes {dimension_semantics = [#tpu.dimension_semantics<parallel>], iteration_bounds = array<i64: 1>, scalar_prefetch = 0 : i64, scratch_operands = 0 : i64, tpu.core_type = #tpu.core_type<tc>, window_params = [{transform_indices = @transform_0, window_bounds = array<i64: 16, 32>}, {pipeline_mode = #tpu.pipeline_mode<synchronous>, transform_indices = @transform_1, window_bounds = array<i64: 32, 96>}, {pipeline_mode = #tpu.pipeline_mode<synchronous>, transform_indices = @transform_2, window_bounds = array<i64: 1, 96>}, {pipeline_mode = #tpu.pipeline_mode<synchronous>, transform_indices = @transform_3, window_bounds = array<i64: 32, 32>}, {pipeline_mode = #tpu.pipeline_mode<synchronous>, transform_indices = @transform_4, window_bounds = array<i64: 1, 32>}, {transform_indices = @transform_5, window_bounds = array<i64: 16, 32>}]} {
    %c0 = arith.constant 0 : index
    %c0_0 = arith.constant 0 : index
    %0 = vector.load %arg1[%c0, %c0_0] : memref<16x32xf32, #tpu.memory_space<vmem>>, vector<16x32xf32>
    %c0_1 = arith.constant 0 : index
    %c0_2 = arith.constant 0 : index
    %1 = vector.load %arg2[%c0_1, %c0_2] : memref<32x96xf32, #tpu.memory_space<vmem>>, vector<32x96xf32>
    %cst = arith.constant dense<0.000000e+00> : vector<16x96xf32>
    %2 = tpu.matmul %0, %1, %cst {dimension_numbers = #tpu.dot_dimension_numbers<[1], [0], [0], [1], [0, 0, 1, 1], [], []>} : vector<16x32xf32>, vector<32x96xf32>, vector<16x96xf32> -> vector<16x96xf32>
    %c0_3 = arith.constant 0 : index
    %c0_4 = arith.constant 0 : index
    %3 = vector.load %arg3[%c0_3, %c0_4] : memref<1x96xf32, #tpu.memory_space<vmem>>, vector<1x96xf32>
    %4 = vector.shape_cast %3 : vector<1x96xf32> to vector<96xf32>
    %5 = vector.shape_cast %4 : vector<96xf32> to vector<1x96xf32>
    %6 = vector.broadcast %5 : vector<1x96xf32> to vector<16x96xf32>
    %7 = arith.addf %2, %6 : vector<16x96xf32>
    %8 = vector.extract_strided_slice %7 {offsets = [0, 0], sizes = [16, 8], strides = [1, 1]} : vector<16x96xf32> to vector<16x8xf32>
    %9 = vector.extract_strided_slice %7 {offsets = [0, 32], sizes = [16, 8], strides = [1, 1]} : vector<16x96xf32> to vector<16x8xf32>
    %10 = vector.extract_strided_slice %7 {offsets = [0, 64], sizes = [16, 8], strides = [1, 1]} : vector<16x96xf32> to vector<16x8xf32>
    %11 = vector.shape_cast %8 : vector<16x8xf32> to vector<2x8x8xf32>
    %12 = vector.shape_cast %9 : vector<16x8xf32> to vector<2x8x8xf32>
    %13 = vector.shape_cast %10 : vector<16x8xf32> to vector<2x8x8xf32>
    "tpu.trace_start"() <{level = 10 : i32, message = "bnd,bmd->bnm"}> : () -> ()
    %cst_5 = arith.constant dense<0.000000e+00> : vector<2x8x8xf32>
    %14 = tpu.matmul %11, %12, %cst_5 {dimension_numbers = #tpu.dot_dimension_numbers<[2], [2], [1], [1], [0, 0, 0, 1, 1, 1], [0], [0]>} : vector<2x8x8xf32>, vector<2x8x8xf32>, vector<2x8x8xf32> -> vector<2x8x8xf32>
    "tpu.trace_stop"() : () -> ()
    %cst_6 = arith.constant dense<0xFF800000> : vector<2x8xf32>
    %15 = vector.multi_reduction <maximumf>, %14, %cst_6 [2] : vector<2x8x8xf32> to vector<2x8xf32>
    %16 = vector.shape_cast %15 : vector<2x8xf32> to vector<2x8x1xf32>
    %17 = vector.broadcast %16 : vector<2x8x1xf32> to vector<2x8x8xf32>
    %18 = arith.subf %14, %17 : vector<2x8x8xf32>
    %19 = math.exp %18 : vector<2x8x8xf32>
    %cst_7 = arith.constant dense<0.000000e+00> : vector<2x8xf32>
    %20 = vector.multi_reduction <add>, %19, %cst_7 [2] : vector<2x8x8xf32> to vector<2x8xf32>
    %21 = vector.shape_cast %20 : vector<2x8xf32> to vector<2x8x1xf32>
    %22 = tpu.reciprocal %21 {approx = true} : vector<2x8x1xf32> -> vector<2x8x1xf32>
    "tpu.trace_start"() <{level = 10 : i32, message = "bnm,bmd->bnd"}> : () -> ()
    %cst_8 = arith.constant dense<0.000000e+00> : vector<2x8x8xf32>
    %23 = tpu.matmul %19, %13, %cst_8 {dimension_numbers = #tpu.dot_dimension_numbers<[2], [1], [1], [2], [0, 0, 0, 1, 1, 2], [0], [0]>} : vector<2x8x8xf32>, vector<2x8x8xf32>, vector<2x8x8xf32> -> vector<2x8x8xf32>
    "tpu.trace_stop"() : () -> ()
    %24 = vector.broadcast %22 : vector<2x8x1xf32> to vector<2x8x8xf32>
    %25 = arith.mulf %23, %24 : vector<2x8x8xf32>
    %26 = arith.addf %11, %25 : vector<2x8x8xf32>
    %27 = vector.shape_cast %26 : vector<2x8x8xf32> to vector<16x8xf32>
    %28 = vector.extract_strided_slice %7 {offsets = [0, 8], sizes = [16, 8], strides = [1, 1]} : vector<16x96xf32> to vector<16x8xf32>
    %29 = vector.extract_strided_slice %7 {offsets = [0, 40], sizes = [16, 8], strides = [1, 1]} : vector<16x96xf32> to vector<16x8xf32>
    %30 = vector.extract_strided_slice %7 {offsets = [0, 72], sizes = [16, 8], strides = [1, 1]} : vector<16x96xf32> to vector<16x8xf32>
    %31 = vector.shape_cast %28 : vector<16x8xf32> to vector<2x8x8xf32>
    %32 = vector.shape_cast %29 : vector<16x8xf32> to vector<2x8x8xf32>
    %33 = vector.shape_cast %30 : vector<16x8xf32> to vector<2x8x8xf32>
    "tpu.trace_start"() <{level = 10 : i32, message = "bnd,bmd->bnm"}> : () -> ()
    %cst_9 = arith.constant dense<0.000000e+00> : vector<2x8x8xf32>
    %34 = tpu.matmul %31, %32, %cst_9 {dimension_numbers = #tpu.dot_dimension_numbers<[2], [2], [1], [1], [0, 0, 0, 1, 1, 1], [0], [0]>} : vector<2x8x8xf32>, vector<2x8x8xf32>, vector<2x8x8xf32> -> vector<2x8x8xf32>
    "tpu.trace_stop"() : () -> ()
    %cst_10 = arith.constant dense<0xFF800000> : vector<2x8xf32>
    %35 = vector.multi_reduction <maximumf>, %34, %cst_10 [2] : vector<2x8x8xf32> to vector<2x8xf32>
    %36 = vector.shape_cast %35 : vector<2x8xf32> to vector<2x8x1xf32>
    %37 = vector.broadcast %36 : vector<2x8x1xf32> to vector<2x8x8xf32>
    %38 = arith.subf %34, %37 : vector<2x8x8xf32>
    %39 = math.exp %38 : vector<2x8x8xf32>
    %cst_11 = arith.constant dense<0.000000e+00> : vector<2x8xf32>
    %40 = vector.multi_reduction <add>, %39, %cst_11 [2] : vector<2x8x8xf32> to vector<2x8xf32>
    %41 = vector.shape_cast %40 : vector<2x8xf32> to vector<2x8x1xf32>
    %42 = tpu.reciprocal %41 {approx = true} : vector<2x8x1xf32> -> vector<2x8x1xf32>
    "tpu.trace_start"() <{level = 10 : i32, message = "bnm,bmd->bnd"}> : () -> ()
    %cst_12 = arith.constant dense<0.000000e+00> : vector<2x8x8xf32>
    %43 = tpu.matmul %39, %33, %cst_12 {dimension_numbers = #tpu.dot_dimension_numbers<[2], [1], [1], [2], [0, 0, 0, 1, 1, 2], [0], [0]>} : vector<2x8x8xf32>, vector<2x8x8xf32>, vector<2x8x8xf32> -> vector<2x8x8xf32>
    "tpu.trace_stop"() : () -> ()
    %44 = vector.broadcast %42 : vector<2x8x1xf32> to vector<2x8x8xf32>
    %45 = arith.mulf %43, %44 : vector<2x8x8xf32>
    %46 = arith.addf %31, %45 : vector<2x8x8xf32>
    %47 = vector.shape_cast %46 : vector<2x8x8xf32> to vector<16x8xf32>
    %48 = vector.extract_strided_slice %7 {offsets = [0, 16], sizes = [16, 8], strides = [1, 1]} : vector<16x96xf32> to vector<16x8xf32>
    %49 = vector.extract_strided_slice %7 {offsets = [0, 48], sizes = [16, 8], strides = [1, 1]} : vector<16x96xf32> to vector<16x8xf32>
    %50 = vector.extract_strided_slice %7 {offsets = [0, 80], sizes = [16, 8], strides = [1, 1]} : vector<16x96xf32> to vector<16x8xf32>
    %51 = vector.shape_cast %48 : vector<16x8xf32> to vector<2x8x8xf32>
    %52 = vector.shape_cast %49 : vector<16x8xf32> to vector<2x8x8xf32>
    %53 = vector.shape_cast %50 : vector<16x8xf32> to vector<2x8x8xf32>
    "tpu.trace_start"() <{level = 10 : i32, message = "bnd,bmd->bnm"}> : () -> ()
    %cst_13 = arith.constant dense<0.000000e+00> : vector<2x8x8xf32>
    %54 = tpu.matmul %51, %52, %cst_13 {dimension_numbers = #tpu.dot_dimension_numbers<[2], [2], [1], [1], [0, 0, 0, 1, 1, 1], [0], [0]>} : vector<2x8x8xf32>, vector<2x8x8xf32>, vector<2x8x8xf32> -> vector<2x8x8xf32>
    "tpu.trace_stop"() : () -> ()
    %cst_14 = arith.constant dense<0xFF800000> : vector<2x8xf32>
    %55 = vector.multi_reduction <maximumf>, %54, %cst_14 [2] : vector<2x8x8xf32> to vector<2x8xf32>
    %56 = vector.shape_cast %55 : vector<2x8xf32> to vector<2x8x1xf32>
    %57 = vector.broadcast %56 : vector<2x8x1xf32> to vector<2x8x8xf32>
    %58 = arith.subf %54, %57 : vector<2x8x8xf32>
    %59 = math.exp %58 : vector<2x8x8xf32>
    %cst_15 = arith.constant dense<0.000000e+00> : vector<2x8xf32>
    %60 = vector.multi_reduction <add>, %59, %cst_15 [2] : vector<2x8x8xf32> to vector<2x8xf32>
    %61 = vector.shape_cast %60 : vector<2x8xf32> to vector<2x8x1xf32>
    %62 = tpu.reciprocal %61 {approx = true} : vector<2x8x1xf32> -> vector<2x8x1xf32>
    "tpu.trace_start"() <{level = 10 : i32, message = "bnm,bmd->bnd"}> : () -> ()
    %cst_16 = arith.constant dense<0.000000e+00> : vector<2x8x8xf32>
    %63 = tpu.matmul %59, %53, %cst_16 {dimension_numbers = #tpu.dot_dimension_numbers<[2], [1], [1], [2], [0, 0, 0, 1, 1, 2], [0], [0]>} : vector<2x8x8xf32>, vector<2x8x8xf32>, vector<2x8x8xf32> -> vector<2x8x8xf32>
    "tpu.trace_stop"() : () -> ()
    %64 = vector.broadcast %62 : vector<2x8x1xf32> to vector<2x8x8xf32>
    %65 = arith.mulf %63, %64 : vector<2x8x8xf32>
    %66 = arith.addf %51, %65 : vector<2x8x8xf32>
    %67 = vector.shape_cast %66 : vector<2x8x8xf32> to vector<16x8xf32>
    %68 = vector.extract_strided_slice %7 {offsets = [0, 24], sizes = [16, 8], strides = [1, 1]} : vector<16x96xf32> to vector<16x8xf32>
    %69 = vector.extract_strided_slice %7 {offsets = [0, 56], sizes = [16, 8], strides = [1, 1]} : vector<16x96xf32> to vector<16x8xf32>
    %70 = vector.extract_strided_slice %7 {offsets = [0, 88], sizes = [16, 8], strides = [1, 1]} : vector<16x96xf32> to vector<16x8xf32>
    %71 = vector.shape_cast %68 : vector<16x8xf32> to vector<2x8x8xf32>
    %72 = vector.shape_cast %69 : vector<16x8xf32> to vector<2x8x8xf32>
    %73 = vector.shape_cast %70 : vector<16x8xf32> to vector<2x8x8xf32>
    "tpu.trace_start"() <{level = 10 : i32, message = "bnd,bmd->bnm"}> : () -> ()
    %cst_17 = arith.constant dense<0.000000e+00> : vector<2x8x8xf32>
    %74 = tpu.matmul %71, %72, %cst_17 {dimension_numbers = #tpu.dot_dimension_numbers<[2], [2], [1], [1], [0, 0, 0, 1, 1, 1], [0], [0]>} : vector<2x8x8xf32>, vector<2x8x8xf32>, vector<2x8x8xf32> -> vector<2x8x8xf32>
    "tpu.trace_stop"() : () -> ()
    %cst_18 = arith.constant dense<0xFF800000> : vector<2x8xf32>
    %75 = vector.multi_reduction <maximumf>, %74, %cst_18 [2] : vector<2x8x8xf32> to vector<2x8xf32>
    %76 = vector.shape_cast %75 : vector<2x8xf32> to vector<2x8x1xf32>
    %77 = vector.broadcast %76 : vector<2x8x1xf32> to vector<2x8x8xf32>
    %78 = arith.subf %74, %77 : vector<2x8x8xf32>
    %79 = math.exp %78 : vector<2x8x8xf32>
    %cst_19 = arith.constant dense<0.000000e+00> : vector<2x8xf32>
    %80 = vector.multi_reduction <add>, %79, %cst_19 [2] : vector<2x8x8xf32> to vector<2x8xf32>
    %81 = vector.shape_cast %80 : vector<2x8xf32> to vector<2x8x1xf32>
    %82 = tpu.reciprocal %81 {approx = true} : vector<2x8x1xf32> -> vector<2x8x1xf32>
    "tpu.trace_start"() <{level = 10 : i32, message = "bnm,bmd->bnd"}> : () -> ()
    %cst_20 = arith.constant dense<0.000000e+00> : vector<2x8x8xf32>
    %83 = tpu.matmul %79, %73, %cst_20 {dimension_numbers = #tpu.dot_dimension_numbers<[2], [1], [1], [2], [0, 0, 0, 1, 1, 2], [0], [0]>} : vector<2x8x8xf32>, vector<2x8x8xf32>, vector<2x8x8xf32> -> vector<2x8x8xf32>
    "tpu.trace_stop"() : () -> ()
    %84 = vector.broadcast %82 : vector<2x8x1xf32> to vector<2x8x8xf32>
    %85 = arith.mulf %83, %84 : vector<2x8x8xf32>
    %86 = arith.addf %71, %85 : vector<2x8x8xf32>
    %87 = vector.shape_cast %86 : vector<2x8x8xf32> to vector<16x8xf32>
    %88 = tpu.concatenate %27, %47, %67, %87 in 1 : vector<16x8xf32>, vector<16x8xf32>, vector<16x8xf32>, vector<16x8xf32> -> vector<16x32xf32>
    %c0_21 = arith.constant 0 : index
    %c0_22 = arith.constant 0 : index
    %89 = vector.load %arg4[%c0_21, %c0_22] : memref<32x32xf32, #tpu.memory_space<vmem>>, vector<32x32xf32>
    %cst_23 = arith.constant dense<0.000000e+00> : vector<16x32xf32>
    %90 = tpu.matmul %88, %89, %cst_23 {dimension_numbers = #tpu.dot_dimension_numbers<[1], [0], [0], [1], [0, 0, 1, 1], [], []>} : vector<16x32xf32>, vector<32x32xf32>, vector<16x32xf32> -> vector<16x32xf32>
    %c0_24 = arith.constant 0 : index
    %c0_25 = arith.constant 0 : index
    %91 = vector.load %arg5[%c0_24, %c0_25] : memref<1x32xf32, #tpu.memory_space<vmem>>, vector<1x32xf32>
    %92 = vector.shape_cast %91 : vector<1x32xf32> to vector<32xf32>
    %93 = vector.shape_cast %92 : vector<32xf32> to vector<1x32xf32>
    %94 = vector.broadcast %93 : vector<1x32xf32> to vector<16x32xf32>
    %95 = arith.addf %90, %94 : vector<16x32xf32>
    %cst_26 = arith.constant 0.000000e+00 : f32
    %96 = vector.broadcast %cst_26 : f32 to vector<16x32xf32>
    %97 = arith.maximumf %95, %96 : vector<16x32xf32>
    %98 = arith.addf %88, %97 : vector<16x32xf32>
    %c0_27 = arith.constant 0 : index
    %c0_28 = arith.constant 0 : index
    %99 = vector.load %arg6[%c0_27, %c0_28] : memref<16x32xf32, #tpu.memory_space<vmem>>, vector<16x32xf32>
    tpu.vector_store %arg6[%c0_27, %c0_28], %98 {strides = array<i32>} : memref<16x32xf32, #tpu.memory_space<vmem>>, vector<16x32xf32>,
    return
  }
  func.func @transform_0(%arg0: i32) -> (i32, i32) {
    %c0_i32 = arith.constant 0 : i32
    %c0_i32_0 = arith.constant 0 : i32
    return %arg0, %c0_i32 : i32, i32
  }
  func.func @transform_1(%arg0: i32) -> (i32, i32) {
    %c0_i32 = arith.constant 0 : i32
    %c0_i32_0 = arith.constant 0 : i32
    %c0_i32_1 = arith.constant 0 : i32
    return %c0_i32, %c0_i32_0 : i32, i32
  }
  func.func @transform_2(%arg0: i32) -> (i32, i32) {
    %c0_i32 = arith.constant 0 : i32
    %c0_i32_0 = arith.constant 0 : i32
    %c0_i32_1 = arith.constant 0 : i32
    return %c0_i32, %c0_i32_0 : i32, i32
  }
  func.func @transform_3(%arg0: i32) -> (i32, i32) {
    %c0_i32 = arith.constant 0 : i32
    %c0_i32_0 = arith.constant 0 : i32
    %c0_i32_1 = arith.constant 0 : i32
    return %c0_i32, %c0_i32_0 : i32, i32
  }
  func.func @transform_4(%arg0: i32) -> (i32, i32) {
    %c0_i32 = arith.constant 0 : i32
    %c0_i32_0 = arith.constant 0 : i32
    %c0_i32_1 = arith.constant 0 : i32
    return %c0_i32, %c0_i32_0 : i32, i32
  }
  func.func @transform_5(%arg0: i32) -> (i32, i32) {
    %c0_i32 = arith.constant 0 : i32
    %c0_i32_0 = arith.constant 0 : i32
    return %arg0, %c0_i32 : i32, i32
  }
}

</mosaic_0001>

<llo_original>
// kernel: tpu_custom_call.1
$region0: #{tpu_custom_call.1}
  #allocation0 [shape = 'u32[]', space=smem, size = 0x4, offset = 0x4, fixed_abs, tag = 'smem constant byte address 0x4 - core index']
  #allocation1 [shape = 'u32[72,128]{1,0:T(1,128)}', space=vmem, size = 0x9000, scoped, tag = 'internal scratch']
  %s0 = inlined_call_operand.hbm [shape: f32[16,32], index: 0, kind: input, shape index: {}]
  %s1 = inlined_call_operand.hbm [shape: f32[32,96], index: 1, kind: input, shape index: {}]
  %s2 = inlined_call_operand.vmem [shape: f32[1,96], index: 2, kind: input, shape index: {}]
  %s3 = inlined_call_operand.hbm [shape: f32[32,32], index: 3, kind: input, shape index: {}]
  %s4 = inlined_call_operand.vmem [shape: f32[1,32], index: 4, kind: input, shape index: {}]
  %s5 = inlined_call_operand.hbm [shape: f32[16,32], index: 5, kind: output, shape index: {}]
  %s6 = sld [smem:[#allocation0]]
  $region42: #{tpu_custom_call.1} parent=0
    _
  %s8 = ssub.s32 1, %s6
  %s9 = scalar_select 0, %s8, %s6
  $region1: #{tpu_custom_call.1} parent=0
    #allocation2 [shape = 'u8[8192]{0}', space=vmem, size = 0x2000, scoped, tag = 'input window, operand 0, single buffered']
    #allocation3 [shape = 's32[1]{0}', space=sflag, size = 0x4, scoped, tag = 'scoped memory for tpu_custom_call.1']
    #allocation4 [shape = 's32[1]{0}', space=sflag, size = 0x4, scoped, tag = 'scoped memory for tpu_custom_call.1']
    #allocation5 [shape = 'u8[16384]{0}', space=vmem, size = 0x4000, scoped, tag = 'input window, operand 1, single buffered']
    #allocation6 [shape = 's32[1]{0}', space=sflag, size = 0x4, scoped, tag = 'scoped memory for tpu_custom_call.1']
    #allocation7 [shape = 'u8[16384]{0}', space=vmem, size = 0x4000, scoped, tag = 'input window, operand 3, single buffered']
    #allocation8 [shape = 'u8[8192]{0}', space=vmem, size = 0x2000, scoped, tag = 'output window, operand 0, single buffered']
    %10 = vsyncpa [#allocation3], 0
    %11 = vsyncpa [#allocation6], 0
    %12 = vsyncpa [#allocation4], 0
    // Predicated region
    $region2: #{tpu_custom_call.1} parent=1 // pred_check
      _
    $region3: #{tpu_custom_call.1} parent=1 // pred_check_branch
      %14 = sbr.rel (0) target = $region5
    $region4: #{tpu_custom_call.1} parent=1 // pred_region
      %16 = vsyncadd [#allocation3], 0
      %s17 = sshll.u32 %s0, 4
      %s18 = int_to_ptr.hbm [resolvable:$true] %s17
      %s19 = sshll.u32 [#allocation2], 4
      %s20 = int_to_ptr.vmem [resolvable:$true] %s19
      %25 = dma.hbm_to_vmem [thread:$0]  %s18, 256, %s20, [#allocation3], 128, 128, 8
    $region5: #{tpu_custom_call.1} parent=1 // pred_fallthru
      _
    // Predicated region
    $region6: #{tpu_custom_call.1} parent=1 // pred_check
      _
    $region7: #{tpu_custom_call.1} parent=1 // pred_check_branch
      %27 = sbr.rel (0) target = $region9
    $region8: #{tpu_custom_call.1} parent=1 // pred_region
      %29 = vsyncadd [#allocation6], 0
      %s30 = sshll.u32 %s1, 4
      %s31 = int_to_ptr.hbm [resolvable:$true] %s30
      %s32 = sshll.u32 [#allocation5], 4
      %s33 = int_to_ptr.vmem [resolvable:$true] %s32
      %38 = dma.hbm_to_vmem [thread:$0]  %s31, 512, %s33, [#allocation6], 128, 128, 8
    $region9: #{tpu_custom_call.1} parent=1 // pred_fallthru
      _
    // Predicated region
    $region10: #{tpu_custom_call.1} parent=1 // pred_check
      _
    $region11: #{tpu_custom_call.1} parent=1 // pred_check_branch
      %40 = sbr.rel (0) target = $region13
    $region12: #{tpu_custom_call.1} parent=1 // pred_region
      _
    $region13: #{tpu_custom_call.1} parent=1 // pred_fallthru
      _
    // Predicated region
    $region14: #{tpu_custom_call.1} parent=1 // pred_check
      _
    $region15: #{tpu_custom_call.1} parent=1 // pred_check_branch
      %42 = sbr.rel (0) target = $region17
    $region16: #{tpu_custom_call.1} parent=1 // pred_region
      %44 = vsyncadd [#allocation6], 0
      %s45 = sshll.u32 %s3, 4
      %s46 = int_to_ptr.hbm [resolvable:$true] %s45
      %s47 = sshll.u32 [#allocation7], 4
      %s48 = int_to_ptr.vmem [resolvable:$true] %s47
      %53 = dma.hbm_to_vmem [thread:$0]  %s46, 512, %s48, [#allocation6], 128, 128, 8
    $region17: #{tpu_custom_call.1} parent=1 // pred_fallthru
      _
    // Predicated region
    $region18: #{tpu_custom_call.1} parent=1 // pred_check
      _
    $region19: #{tpu_custom_call.1} parent=1 // pred_check_branch
      %55 = sbr.rel (0) target = $region21
    $region20: #{tpu_custom_call.1} parent=1 // pred_region
      _
    $region21: #{tpu_custom_call.1} parent=1 // pred_fallthru
      _
    // Predicated region
    $region22: #{tpu_custom_call.1} parent=1 // pred_check
      _
    $region23: #{tpu_custom_call.1} parent=1 // pred_check_branch
      %57 = sbr.rel (0) target = $region25
    $region24: #{tpu_custom_call.1} parent=1 // pred_region
      %59 = dma.done [#allocation3], 256
    $region25: #{tpu_custom_call.1} parent=1 // pred_fallthru
      _
    // Predicated region
    $region26: #{tpu_custom_call.1} parent=1 // pred_check
      _
    $region27: #{tpu_custom_call.1} parent=1 // pred_check_branch
      %61 = sbr.rel (0) target = $region29
    $region28: #{tpu_custom_call.1} parent=1 // pred_region
      %63 = dma.done [#allocation6], 512
    $region29: #{tpu_custom_call.1} parent=1 // pred_fallthru
      _
    // Predicated region
    $region30: #{tpu_custom_call.1} parent=1 // pred_check
      _
    $region31: #{tpu_custom_call.1} parent=1 // pred_check_branch
      %65 = sbr.rel (0) target = $region33
    $region32: #{tpu_custom_call.1} parent=1 // pred_region
      %67 = dma.done [#allocation6], 512
    $region33: #{tpu_custom_call.1} parent=1 // pred_fallthru
      _
    %v68 = vld [vmem:[#allocation2] sm:$0xff]
    %v69 = vld [vmem:[#allocation2 + $0x8] sm:$0xff]
    %v70 = vld [vmem:[#allocation5] sm:$0xff]
    %v71 = vld [vmem:[#allocation5 + $0x8] sm:$0xff]
    %v72 = vld [vmem:[#allocation5 + $0x10] sm:$0xff]
    %v73 = vld [vmem:[#allocation5 + $0x18] sm:$0xff]
    %v74 = vld [vmem:[%s2] sm:$0x1]
    %v76 = vperm.slane %v74, 0
    %vm78 = vcmask 261120
    %v80 = vsel %vm78, %v68, 0
    %v83 = vsel %vm78, %v69, 0
    %85 = vmatpush.msra.mxu0 0.0
    %86 = vmatpush.msra.mxu0 0.0
    %87 = vmatpush.msra.mxu0 0.0
    %88 = vmatpush.msra.mxu0 0.0
    %89 = vmatpush.msra.mxu0 0.0
    %90 = vmatpush.msra.mxu0 0.0
    %91 = vmatpush.msra.mxu0 0.0
    %92 = vmatpush.msra.mxu0 0.0
    %93 = vmatpush.msra.mxu0 0.0
    %94 = vmatpush.msra.mxu0 0.0
    %95 = vmatpush.msra.mxu0 0.0
    %96 = vmatpush.msra.mxu0 0.0
    %97 = vmatpush.msra.mxu0 %v73
    %98 = vmatpush.msra.mxu0 %v72
    %99 = vmatpush.msra.mxu0 %v71
    %100 = vmatpush.msra.mxu0 %v70
    %101 = vmatmul.f32.gmra.mxu0 %v80
    %v102 = vpop.f32.mrf.mxu0
    %v103 = vadd.f32 %v76, %v102
    %104 = vmatmul.f32.gmra.mxu0 %v83
    %v105 = vpop.f32.mrf.mxu0
    %v106 = vadd.f32 %v76, %v105
    %107 = vdwg.mxu0
    %109 = vrot.lane.b32.xlu0 %v103, 96
    %v110 = vpop.permute.xlu0 %109
    %vm111 = vcmask 64512
    %v112 = vsel %vm111, %v103, 0
    %v114 = vsel %vm111, %v110, 0
    %116 = vmatpush.xpose.msra.mxu0 0.0
    %117 = vmatpush.xpose.msra.mxu0 0.0
    %118 = vmatpush.xpose.msra.mxu0 0.0
    %119 = vmatpush.xpose.msra.mxu0 0.0
    %120 = vmatpush.xpose.msra.mxu0 0.0
    %121 = vmatpush.xpose.msra.mxu0 0.0
    %122 = vmatpush.xpose.msra.mxu0 0.0
    %123 = vmatpush.xpose.msra.mxu0 0.0
    %124 = vmatpush.xpose.msra.mxu0 0.0
    %125 = vmatpush.xpose.msra.mxu0 0.0
    %126 = vmatpush.xpose.msra.mxu0 0.0
    %127 = vmatpush.xpose.msra.mxu0 0.0
    %128 = vmatpush.xpose.msra.mxu0 0.0
    %129 = vmatpush.xpose.msra.mxu0 0.0
    %130 = vmatpush.xpose.msra.mxu0 0.0
    %131 = vmatpush.xpose.msra.mxu0 %v114
    %132 = vmatmul.f32.gmra.mxu0 %v112
    %v133 = vpop.f32.mrf.mxu0
    %v134 = vadd.f32 0.0, %v133
    %135 = vdwg.mxu0
    %137 = vrot.lane.b32.xlu0 %v106, 96
    %v138 = vpop.permute.xlu0 %137
    %v139 = vsel %vm111, %v106, 0
    %v141 = vsel %vm111, %v138, 0
    %143 = vmatpush.xpose.msra.mxu0 0.0
    %144 = vmatpush.xpose.msra.mxu0 0.0
    %145 = vmatpush.xpose.msra.mxu0 0.0
    %146 = vmatpush.xpose.msra.mxu0 0.0
    %147 = vmatpush.xpose.msra.mxu0 0.0
    %148 = vmatpush.xpose.msra.mxu0 0.0
    %149 = vmatpush.xpose.msra.mxu0 0.0
    %150 = vmatpush.xpose.msra.mxu0 0.0
    %151 = vmatpush.xpose.msra.mxu0 0.0
    %152 = vmatpush.xpose.msra.mxu0 0.0
    %153 = vmatpush.xpose.msra.mxu0 0.0
    %154 = vmatpush.xpose.msra.mxu0 0.0
    %155 = vmatpush.xpose.msra.mxu0 0.0
    %156 = vmatpush.xpose.msra.mxu0 0.0
    %157 = vmatpush.xpose.msra.mxu0 0.0
    %158 = vmatpush.xpose.msra.mxu0 %v141
    %159 = vmatmul.f32.gmra.mxu0 %v139
    %v160 = vpop.f32.mrf.mxu0
    %v161 = vadd.f32 0.0, %v160
    %162 = vdwg.mxu0
    %v163 = vsel %vm111, %v134, -inf
    %164 = vmax.xlane.f32.xlu0 %v163
    %v165 = vpop.xlane.xlu0 %164
    %v166 = vsel %vm111, %v161, -inf
    %167 = vmax.xlane.f32.xlu0 %v166
    %v168 = vpop.xlane.xlu0 %167
    %v169 = vsub.f32 %v134, %v165
    %v170 = vsub.f32 %v161, %v168
    %v171 = vmul.f32 %v169, 1.442695
    %v172 = vpow.pop %v171
    %v173 = vmul.f32 %v170, 1.442695
    %v174 = vpow.pop %v173
    %v175 = vsel %vm111, %v172, 0.0
    %176 = vadd.xlane.f32.xlu0 %v175
    %v177 = vpop.xlane.xlu0 %176
    %v178 = vsel %vm111, %v174, 0.0
    %179 = vadd.xlane.f32.xlu0 %v178
    %v180 = vpop.xlane.xlu0 %179
    %v181 = vrcp.pop %v177
    %v182 = vrcp.pop %v180
    %183 = vrot.lane.b32.xlu0 %v103, 64
    %v184 = vpop.permute.xlu0 %183
    %v187 = vsel %vm111, %v172, 0
    %189 = vmatpush.msra.mxu0 0.0
    %190 = vmatpush.msra.mxu0 0.0
    %191 = vmatpush.msra.mxu0 0.0
    %192 = vmatpush.msra.mxu0 0.0
    %193 = vmatpush.msra.mxu0 0.0
    %194 = vmatpush.msra.mxu0 0.0
    %195 = vmatpush.msra.mxu0 0.0
    %196 = vmatpush.msra.mxu0 0.0
    %197 = vmatpush.msra.mxu0 0.0
    %198 = vmatpush.msra.mxu0 0.0
    %199 = vmatpush.msra.mxu0 0.0
    %200 = vmatpush.msra.mxu0 0.0
    %201 = vmatpush.msra.mxu0 0.0
    %202 = vmatpush.msra.mxu0 0.0
    %203 = vmatpush.msra.mxu0 0.0
    %204 = vmatpush.msra.mxu0 %v184
    %205 = vmatmul.f32.gmra.mxu0 %v187
    %v206 = vpop.f32.mrf.mxu0
    %v207 = vadd.f32 0.0, %v206
    %208 = vdwg.mxu0
    %209 = vrot.lane.b32.xlu0 %v106, 64
    %v210 = vpop.permute.xlu0 %209
    %v213 = vsel %vm111, %v174, 0
    %215 = vmatpush.msra.mxu0 0.0
    %216 = vmatpush.msra.mxu0 0.0
    %217 = vmatpush.msra.mxu0 0.0
    %218 = vmatpush.msra.mxu0 0.0
    %219 = vmatpush.msra.mxu0 0.0
    %220 = vmatpush.msra.mxu0 0.0
    %221 = vmatpush.msra.mxu0 0.0
    %222 = vmatpush.msra.mxu0 0.0
    %223 = vmatpush.msra.mxu0 0.0
    %224 = vmatpush.msra.mxu0 0.0
    %225 = vmatpush.msra.mxu0 0.0
    %226 = vmatpush.msra.mxu0 0.0
    %227 = vmatpush.msra.mxu0 0.0
    %228 = vmatpush.msra.mxu0 0.0
    %229 = vmatpush.msra.mxu0 0.0
    %230 = vmatpush.msra.mxu0 %v210
    %231 = vmatmul.f32.gmra.mxu0 %v213
    %v232 = vpop.f32.mrf.mxu0
    %v233 = vadd.f32 0.0, %v232
    %234 = vdwg.mxu0
    %v235 = vmul.f32 %v207, %v181
    %v236 = vmul.f32 %v233, %v182
    %v237 = vadd.f32 %v103, %v235
    %v238 = vadd.f32 %v106, %v236
    %239 = vrot.lane.b32.xlu0 %v103, 120
    %v240 = vpop.permute.xlu0 %239
    %241 = vrot.lane.b32.xlu0 %v103, 88
    %v242 = vpop.permute.xlu0 %241
    %v243 = vsel %vm111, %v240, 0
    %v245 = vsel %vm111, %v242, 0
    %247 = vmatpush.xpose.msra.mxu0 0.0
    %248 = vmatpush.xpose.msra.mxu0 0.0
    %249 = vmatpush.xpose.msra.mxu0 0.0
    %250 = vmatpush.xpose.msra.mxu0 0.0
    %251 = vmatpush.xpose.msra.mxu0 0.0
    %252 = vmatpush.xpose.msra.mxu0 0.0
    %253 = vmatpush.xpose.msra.mxu0 0.0
    %254 = vmatpush.xpose.msra.mxu0 0.0
    %255 = vmatpush.xpose.msra.mxu0 0.0
    %256 = vmatpush.xpose.msra.mxu0 0.0
    %257 = vmatpush.xpose.msra.mxu0 0.0
    %258 = vmatpush.xpose.msra.mxu0 0.0
    %259 = vmatpush.xpose.msra.mxu0 0.0
    %260 = vmatpush.xpose.msra.mxu0 0.0
    %261 = vmatpush.xpose.msra.mxu0 0.0
    %262 = vmatpush.xpose.msra.mxu0 %v245
    %263 = vmatmul.f32.gmra.mxu0 %v243
    %v264 = vpop.f32.mrf.mxu0
    %v265 = vadd.f32 0.0, %v264
    %266 = vdwg.mxu0
    %267 = vrot.lane.b32.xlu0 %v106, 120
    %v268 = vpop.permute.xlu0 %267
    %269 = vrot.lane.b32.xlu0 %v106, 88
    %v270 = vpop.permute.xlu0 %269
    %v271 = vsel %vm111, %v268, 0
    %v273 = vsel %vm111, %v270, 0
    %275 = vmatpush.xpose.msra.mxu0 0.0
    %276 = vmatpush.xpose.msra.mxu0 0.0
    %277 = vmatpush.xpose.msra.mxu0 0.0
    %278 = vmatpush.xpose.msra.mxu0 0.0
    %279 = vmatpush.xpose.msra.mxu0 0.0
    %280 = vmatpush.xpose.msra.mxu0 0.0
    %281 = vmatpush.xpose.msra.mxu0 0.0
    %282 = vmatpush.xpose.msra.mxu0 0.0
    %283 = vmatpush.xpose.msra.mxu0 0.0
    %284 = vmatpush.xpose.msra.mxu0 0.0
    %285 = vmatpush.xpose.msra.mxu0 0.0
    %286 = vmatpush.xpose.msra.mxu0 0.0
    %287 = vmatpush.xpose.msra.mxu0 0.0
    %288 = vmatpush.xpose.msra.mxu0 0.0
    %289 = vmatpush.xpose.msra.mxu0 0.0
    %290 = vmatpush.xpose.msra.mxu0 %v273
    %291 = vmatmul.f32.gmra.mxu0 %v271
    %v292 = vpop.f32.mrf.mxu0
    %v293 = vadd.f32 0.0, %v292
    %294 = vdwg.mxu0
    %v295 = vsel %vm111, %v265, -inf
    %296 = vmax.xlane.f32.xlu0 %v295
    %v297 = vpop.xlane.xlu0 %296
    %v298 = vsel %vm111, %v293, -inf
    %299 = vmax.xlane.f32.xlu0 %v298
    %v300 = vpop.xlane.xlu0 %299
    %v301 = vsub.f32 %v265, %v297
    %v302 = vsub.f32 %v293, %v300
    %v303 = vmul.f32 %v301, 1.442695
    %v304 = vpow.pop %v303
    %v305 = vmul.f32 %v302, 1.442695
    %v306 = vpow.pop %v305
    %v307 = vsel %vm111, %v304, 0.0
    %308 = vadd.xlane.f32.xlu0 %v307
    %v309 = vpop.xlane.xlu0 %308
    %v310 = vsel %vm111, %v306, 0.0
    %311 = vadd.xlane.f32.xlu0 %v310
    %v312 = vpop.xlane.xlu0 %311
    %v313 = vrcp.pop %v309
    %v314 = vrcp.pop %v312
    %315 = vrot.lane.b32.xlu0 %v103, 56
    %v316 = vpop.permute.xlu0 %315
    %v319 = vsel %vm111, %v304, 0
    %321 = vmatpush.msra.mxu0 0.0
    %322 = vmatpush.msra.mxu0 0.0
    %323 = vmatpush.msra.mxu0 0.0
    %324 = vmatpush.msra.mxu0 0.0
    %325 = vmatpush.msra.mxu0 0.0
    %326 = vmatpush.msra.mxu0 0.0
    %327 = vmatpush.msra.mxu0 0.0
    %328 = vmatpush.msra.mxu0 0.0
    %329 = vmatpush.msra.mxu0 0.0
    %330 = vmatpush.msra.mxu0 0.0
    %331 = vmatpush.msra.mxu0 0.0
    %332 = vmatpush.msra.mxu0 0.0
    %333 = vmatpush.msra.mxu0 0.0
    %334 = vmatpush.msra.mxu0 0.0
    %335 = vmatpush.msra.mxu0 0.0
    %336 = vmatpush.msra.mxu0 %v316
    %337 = vmatmul.f32.gmra.mxu0 %v319
    %v338 = vpop.f32.mrf.mxu0
    %v339 = vadd.f32 0.0, %v338
    %340 = vdwg.mxu0
    %341 = vrot.lane.b32.xlu0 %v106, 56
    %v342 = vpop.permute.xlu0 %341
    %v345 = vsel %vm111, %v306, 0
    %347 = vmatpush.msra.mxu0 0.0
    %348 = vmatpush.msra.mxu0 0.0
    %349 = vmatpush.msra.mxu0 0.0
    %350 = vmatpush.msra.mxu0 0.0
    %351 = vmatpush.msra.mxu0 0.0
    %352 = vmatpush.msra.mxu0 0.0
    %353 = vmatpush.msra.mxu0 0.0
    %354 = vmatpush.msra.mxu0 0.0
    %355 = vmatpush.msra.mxu0 0.0
    %356 = vmatpush.msra.mxu0 0.0
    %357 = vmatpush.msra.mxu0 0.0
    %358 = vmatpush.msra.mxu0 0.0
    %359 = vmatpush.msra.mxu0 0.0
    %360 = vmatpush.msra.mxu0 0.0
    %361 = vmatpush.msra.mxu0 0.0
    %362 = vmatpush.msra.mxu0 %v342
    %363 = vmatmul.f32.gmra.mxu0 %v345
    %v364 = vpop.f32.mrf.mxu0
    %v365 = vadd.f32 0.0, %v364
    %366 = vdwg.mxu0
    %v367 = vmul.f32 %v339, %v313
    %v368 = vmul.f32 %v365, %v314
    %371 = vrot.lane.b32.xlu0 %v367, 8
    %v372 = vpop.permute.xlu0 %371
    %373 = vrot.lane.b32.xlu0 %v368, 8
    %v374 = vpop.permute.xlu0 %373
    %v377 = vadd.f32 %v103, %v372
    %v378 = vadd.f32 %v106, %v374
    %379 = vrot.lane.b32.xlu0 %v103, 112
    %v380 = vpop.permute.xlu0 %379
    %381 = vrot.lane.b32.xlu0 %v103, 80
    %v382 = vpop.permute.xlu0 %381
    %v383 = vsel %vm111, %v380, 0
    %v385 = vsel %vm111, %v382, 0
    %387 = vmatpush.xpose.msra.mxu0 0.0
    %388 = vmatpush.xpose.msra.mxu0 0.0
    %389 = vmatpush.xpose.msra.mxu0 0.0
    %390 = vmatpush.xpose.msra.mxu0 0.0
    %391 = vmatpush.xpose.msra.mxu0 0.0
    %392 = vmatpush.xpose.msra.mxu0 0.0
    %393 = vmatpush.xpose.msra.mxu0 0.0
    %394 = vmatpush.xpose.msra.mxu0 0.0
    %395 = vmatpush.xpose.msra.mxu0 0.0
    %396 = vmatpush.xpose.msra.mxu0 0.0
    %397 = vmatpush.xpose.msra.mxu0 0.0
    %398 = vmatpush.xpose.msra.mxu0 0.0
    %399 = vmatpush.xpose.msra.mxu0 0.0
    %400 = vmatpush.xpose.msra.mxu0 0.0
    %401 = vmatpush.xpose.msra.mxu0 0.0
    %402 = vmatpush.xpose.msra.mxu0 %v385
    %403 = vmatmul.f32.gmra.mxu0 %v383
    %v404 = vpop.f32.mrf.mxu0
    %v405 = vadd.f32 0.0, %v404
    %406 = vdwg.mxu0
    %407 = vrot.lane.b32.xlu0 %v106, 112
    %v408 = vpop.permute.xlu0 %407
    %409 = vrot.lane.b32.xlu0 %v106, 80
    %v410 = vpop.permute.xlu0 %409
    %v411 = vsel %vm111, %v408, 0
    %v413 = vsel %vm111, %v410, 0
    %415 = vmatpush.xpose.msra.mxu0 0.0
    %416 = vmatpush.xpose.msra.mxu0 0.0
    %417 = vmatpush.xpose.msra.mxu0 0.0
    %418 = vmatpush.xpose.msra.mxu0 0.0
    %419 = vmatpush.xpose.msra.mxu0 0.0
    %420 = vmatpush.xpose.msra.mxu0 0.0
    %421 = vmatpush.xpose.msra.mxu0 0.0
    %422 = vmatpush.xpose.msra.mxu0 0.0
    %423 = vmatpush.xpose.msra.mxu0 0.0
    %424 = vmatpush.xpose.msra.mxu0 0.0
    %425 = vmatpush.xpose.msra.mxu0 0.0
    %426 = vmatpush.xpose.msra.mxu0 0.0
    %427 = vmatpush.xpose.msra.mxu0 0.0
    %428 = vmatpush.xpose.msra.mxu0 0.0
    %429 = vmatpush.xpose.msra.mxu0 0.0
    %430 = vmatpush.xpose.msra.mxu0 %v413
    %431 = vmatmul.f32.gmra.mxu0 %v411
    %v432 = vpop.f32.mrf.mxu0
    %v433 = vadd.f32 0.0, %v432
    %434 = vdwg.mxu0
    %v435 = vsel %vm111, %v405, -inf
    %436 = vmax.xlane.f32.xlu0 %v435
    %v437 = vpop.xlane.xlu0 %436
    %v438 = vsel %vm111, %v433, -inf
    %439 = vmax.xlane.f32.xlu0 %v438
    %v440 = vpop.xlane.xlu0 %439
    %v441 = vsub.f32 %v405, %v437
    %v442 = vsub.f32 %v433, %v440
    %v443 = vmul.f32 %v441, 1.442695
    %v444 = vpow.pop %v443
    %v445 = vmul.f32 %v442, 1.442695
    %v446 = vpow.pop %v445
    %v447 = vsel %vm111, %v444, 0.0
    %448 = vadd.xlane.f32.xlu0 %v447
    %v449 = vpop.xlane.xlu0 %448
    %v450 = vsel %vm111, %v446, 0.0
    %451 = vadd.xlane.f32.xlu0 %v450
    %v452 = vpop.xlane.xlu0 %451
    %v453 = vrcp.pop %v449
    %v454 = vrcp.pop %v452
    %455 = vrot.lane.b32.xlu0 %v103, 48
    %v456 = vpop.permute.xlu0 %455
    %v459 = vsel %vm111, %v444, 0
    %461 = vmatpush.msra.mxu0 0.0
    %462 = vmatpush.msra.mxu0 0.0
    %463 = vmatpush.msra.mxu0 0.0
    %464 = vmatpush.msra.mxu0 0.0
    %465 = vmatpush.msra.mxu0 0.0
    %466 = vmatpush.msra.mxu0 0.0
    %467 = vmatpush.msra.mxu0 0.0
    %468 = vmatpush.msra.mxu0 0.0
    %469 = vmatpush.msra.mxu0 0.0
    %470 = vmatpush.msra.mxu0 0.0
    %471 = vmatpush.msra.mxu0 0.0
    %472 = vmatpush.msra.mxu0 0.0
    %473 = vmatpush.msra.mxu0 0.0
    %474 = vmatpush.msra.mxu0 0.0
    %475 = vmatpush.msra.mxu0 0.0
    %476 = vmatpush.msra.mxu0 %v456
    %477 = vmatmul.f32.gmra.mxu0 %v459
    %v478 = vpop.f32.mrf.mxu0
    %v479 = vadd.f32 0.0, %v478
    %480 = vdwg.mxu0
    %481 = vrot.lane.b32.xlu0 %v106, 48
    %v482 = vpop.permute.xlu0 %481
    %v485 = vsel %vm111, %v446, 0
    %487 = vmatpush.msra.mxu0 0.0
    %488 = vmatpush.msra.mxu0 0.0
    %489 = vmatpush.msra.mxu0 0.0
    %490 = vmatpush.msra.mxu0 0.0
    %491 = vmatpush.msra.mxu0 0.0
    %492 = vmatpush.msra.mxu0 0.0
    %493 = vmatpush.msra.mxu0 0.0
    %494 = vmatpush.msra.mxu0 0.0
    %495 = vmatpush.msra.mxu0 0.0
    %496 = vmatpush.msra.mxu0 0.0
    %497 = vmatpush.msra.mxu0 0.0
    %498 = vmatpush.msra.mxu0 0.0
    %499 = vmatpush.msra.mxu0 0.0
    %500 = vmatpush.msra.mxu0 0.0
    %501 = vmatpush.msra.mxu0 0.0
    %502 = vmatpush.msra.mxu0 %v482
    %503 = vmatmul.f32.gmra.mxu0 %v485
    %v504 = vpop.f32.mrf.mxu0
    %v505 = vadd.f32 0.0, %v504
    %506 = vdwg.mxu0
    %v507 = vmul.f32 %v479, %v453
    %v508 = vmul.f32 %v505, %v454
    %511 = vrot.lane.b32.xlu0 %v507, 16
    %v512 = vpop.permute.xlu0 %511
    %513 = vrot.lane.b32.xlu0 %v508, 16
    %v514 = vpop.permute.xlu0 %513
    %v517 = vadd.f32 %v103, %v512
    %v518 = vadd.f32 %v106, %v514
    %519 = vrot.lane.b32.xlu0 %v103, 104
    %v520 = vpop.permute.xlu0 %519
    %521 = vrot.lane.b32.xlu0 %v103, 72
    %v522 = vpop.permute.xlu0 %521
    %v523 = vsel %vm111, %v520, 0
    %v525 = vsel %vm111, %v522, 0
    %527 = vmatpush.xpose.msra.mxu0 0.0
    %528 = vmatpush.xpose.msra.mxu0 0.0
    %529 = vmatpush.xpose.msra.mxu0 0.0
    %530 = vmatpush.xpose.msra.mxu0 0.0
    %531 = vmatpush.xpose.msra.mxu0 0.0
    %532 = vmatpush.xpose.msra.mxu0 0.0
    %533 = vmatpush.xpose.msra.mxu0 0.0
    %534 = vmatpush.xpose.msra.mxu0 0.0
    %535 = vmatpush.xpose.msra.mxu0 0.0
    %536 = vmatpush.xpose.msra.mxu0 0.0
    %537 = vmatpush.xpose.msra.mxu0 0.0
    %538 = vmatpush.xpose.msra.mxu0 0.0
    %539 = vmatpush.xpose.msra.mxu0 0.0
    %540 = vmatpush.xpose.msra.mxu0 0.0
    %541 = vmatpush.xpose.msra.mxu0 0.0
    %542 = vmatpush.xpose.msra.mxu0 %v525
    %543 = vmatmul.f32.gmra.mxu0 %v523
    %v544 = vpop.f32.mrf.mxu0
    %v545 = vadd.f32 0.0, %v544
    %546 = vdwg.mxu0
    %547 = vrot.lane.b32.xlu0 %v106, 104
    %v548 = vpop.permute.xlu0 %547
    %549 = vrot.lane.b32.xlu0 %v106, 72
    %v550 = vpop.permute.xlu0 %549
    %v551 = vsel %vm111, %v548, 0
    %v553 = vsel %vm111, %v550, 0
    %555 = vmatpush.xpose.msra.mxu0 0.0
    %556 = vmatpush.xpose.msra.mxu0 0.0
    %557 = vmatpush.xpose.msra.mxu0 0.0
    %558 = vmatpush.xpose.msra.mxu0 0.0
    %559 = vmatpush.xpose.msra.mxu0 0.0
    %560 = vmatpush.xpose.msra.mxu0 0.0
    %561 = vmatpush.xpose.msra.mxu0 0.0
    %562 = vmatpush.xpose.msra.mxu0 0.0
    %563 = vmatpush.xpose.msra.mxu0 0.0
    %564 = vmatpush.xpose.msra.mxu0 0.0
    %565 = vmatpush.xpose.msra.mxu0 0.0
    %566 = vmatpush.xpose.msra.mxu0 0.0
    %567 = vmatpush.xpose.msra.mxu0 0.0
    %568 = vmatpush.xpose.msra.mxu0 0.0
    %569 = vmatpush.xpose.msra.mxu0 0.0
    %570 = vmatpush.xpose.msra.mxu0 %v553
    %571 = vmatmul.f32.gmra.mxu0 %v551
    %v572 = vpop.f32.mrf.mxu0
    %v573 = vadd.f32 0.0, %v572
    %574 = vdwg.mxu0
    %v575 = vsel %vm111, %v545, -inf
    %576 = vmax.xlane.f32.xlu0 %v575
    %v577 = vpop.xlane.xlu0 %576
    %v578 = vsel %vm111, %v573, -inf
    %579 = vmax.xlane.f32.xlu0 %v578
    %v580 = vpop.xlane.xlu0 %579
    %v581 = vsub.f32 %v545, %v577
    %v582 = vsub.f32 %v573, %v580
    %v583 = vmul.f32 %v581, 1.442695
    %v584 = vpow.pop %v583
    %v585 = vmul.f32 %v582, 1.442695
    %v586 = vpow.pop %v585
    %v587 = vsel %vm111, %v584, 0.0
    %588 = vadd.xlane.f32.xlu0 %v587
    %v589 = vpop.xlane.xlu0 %588
    %v590 = vsel %vm111, %v586, 0.0
    %591 = vadd.xlane.f32.xlu0 %v590
    %v592 = vpop.xlane.xlu0 %591
    %v593 = vrcp.pop %v589
    %v594 = vrcp.pop %v592
    %595 = vrot.lane.b32.xlu0 %v103, 40
    %v596 = vpop.permute.xlu0 %595
    %v599 = vsel %vm111, %v584, 0
    %601 = vmatpush.msra.mxu0 0.0
    %602 = vmatpush.msra.mxu0 0.0
    %603 = vmatpush.msra.mxu0 0.0
    %604 = vmatpush.msra.mxu0 0.0
    %605 = vmatpush.msra.mxu0 0.0
    %606 = vmatpush.msra.mxu0 0.0
    %607 = vmatpush.msra.mxu0 0.0
    %608 = vmatpush.msra.mxu0 0.0
    %609 = vmatpush.msra.mxu0 0.0
    %610 = vmatpush.msra.mxu0 0.0
    %611 = vmatpush.msra.mxu0 0.0
    %612 = vmatpush.msra.mxu0 0.0
    %613 = vmatpush.msra.mxu0 0.0
    %614 = vmatpush.msra.mxu0 0.0
    %615 = vmatpush.msra.mxu0 0.0
    %616 = vmatpush.msra.mxu0 %v596
    %617 = vmatmul.f32.gmra.mxu0 %v599
    %v618 = vpop.f32.mrf.mxu0
    %v619 = vadd.f32 0.0, %v618
    %620 = vdwg.mxu0
    %621 = vrot.lane.b32.xlu0 %v106, 40
    %v622 = vpop.permute.xlu0 %621
    %v625 = vsel %vm111, %v586, 0
    %627 = vmatpush.msra.mxu0 0.0
    %628 = vmatpush.msra.mxu0 0.0
    %629 = vmatpush.msra.mxu0 0.0
    %630 = vmatpush.msra.mxu0 0.0
    %631 = vmatpush.msra.mxu0 0.0
    %632 = vmatpush.msra.mxu0 0.0
    %633 = vmatpush.msra.mxu0 0.0
    %634 = vmatpush.msra.mxu0 0.0
    %635 = vmatpush.msra.mxu0 0.0
    %636 = vmatpush.msra.mxu0 0.0
    %637 = vmatpush.msra.mxu0 0.0
    %638 = vmatpush.msra.mxu0 0.0
    %639 = vmatpush.msra.mxu0 0.0
    %640 = vmatpush.msra.mxu0 0.0
    %641 = vmatpush.msra.mxu0 0.0
    %642 = vmatpush.msra.mxu0 %v622
    %643 = vmatmul.f32.gmra.mxu0 %v625
    %v644 = vpop.f32.mrf.mxu0
    %v645 = vadd.f32 0.0, %v644
    %646 = vdwg.mxu0
    %v647 = vmul.f32 %v619, %v593
    %v648 = vmul.f32 %v645, %v594
    %651 = vrot.lane.b32.xlu0 %v647, 24
    %v652 = vpop.permute.xlu0 %651
    %653 = vrot.lane.b32.xlu0 %v648, 24
    %v654 = vpop.permute.xlu0 %653
    %v657 = vadd.f32 %v103, %v652
    %v658 = vadd.f32 %v106, %v654
    %v659 = vsel %vm111, %v237, %v377
    %v660 = vsel %vm111, %v238, %v378
    %vm661 = vcmask 130048
    %v662 = vsel %vm661, %v659, %v517
    %v663 = vsel %vm661, %v660, %v518
    %vm664 = vcmask 195584
    %v665 = vsel %vm664, %v662, %v657
    %v666 = vsel %vm664, %v663, %v658
    %v667 = vld [vmem:[#allocation7] sm:$0xff]
    %v668 = vld [vmem:[#allocation7 + $0x8] sm:$0xff]
    %v669 = vld [vmem:[#allocation7 + $0x10] sm:$0xff]
    %v670 = vld [vmem:[#allocation7 + $0x18] sm:$0xff]
    %v671 = vld [vmem:[%s4] sm:$0x1]
    %v673 = vperm.slane %v671, 0
    %v676 = vsel %vm78, %v665, 0
    %v679 = vsel %vm78, %v666, 0
    %681 = vmatpush.msra.mxu0 0.0
    %682 = vmatpush.msra.mxu0 0.0
    %683 = vmatpush.msra.mxu0 0.0
    %684 = vmatpush.msra.mxu0 0.0
    %685 = vmatpush.msra.mxu0 0.0
    %686 = vmatpush.msra.mxu0 0.0
    %687 = vmatpush.msra.mxu0 0.0
    %688 = vmatpush.msra.mxu0 0.0
    %689 = vmatpush.msra.mxu0 0.0
    %690 = vmatpush.msra.mxu0 0.0
    %691 = vmatpush.msra.mxu0 0.0
    %692 = vmatpush.msra.mxu0 0.0
    %693 = vmatpush.msra.mxu0 %v670
    %694 = vmatpush.msra.mxu0 %v669
    %695 = vmatpush.msra.mxu0 %v668
    %696 = vmatpush.msra.mxu0 %v667
    %697 = vmatmul.f32.gmra.mxu0 %v676
    %v698 = vpop.f32.mrf.mxu0
    %v699 = vadd.f32 %v673, %v698
    %700 = vmatmul.f32.gmra.mxu0 %v679
    %v701 = vpop.f32.mrf.mxu0
    %v702 = vadd.f32 %v673, %v701
    %703 = vdwg.mxu0
    %v704 = vmax.f32 %v699, 0.0
    %v705 = vmax.f32 %v702, 0.0
    %v706 = vadd.f32 %v665, %v704
    %v707 = vadd.f32 %v666, %v705
    %708 = vst.msk [vmem:[#allocation8] sm:$0xff] %vm78, %v706
    %709 = vst.msk [vmem:[#allocation8 + $0x8] sm:$0xff] %vm78, %v707
    // Predicated region
    $region34: #{tpu_custom_call.1} parent=1 // pred_check
      _
    $region35: #{tpu_custom_call.1} parent=1 // pred_check_branch
      %711 = sbr.rel (0) target = $region37
    $region36: #{tpu_custom_call.1} parent=1 // pred_region
      %713 = vsyncadd [#allocation4], 0
      %s714 = sshll.u32 [#allocation8], 4
      %s715 = int_to_ptr.vmem [resolvable:$true] %s714
      %s716 = sshll.u32 %s5, 4
      %s717 = int_to_ptr.hbm [resolvable:$true] %s716
      %722 = dma.vmem_to_hbm [thread:$0]  %s715, 256, %s717, [#allocation4], 128, 128, 8
    $region37: #{tpu_custom_call.1} parent=1 // pred_fallthru
      _
    // Predicated region
    $region38: #{tpu_custom_call.1} parent=1 // pred_check
      _
    $region39: #{tpu_custom_call.1} parent=1 // pred_check_branch
      %724 = sbr.rel (0) target = $region41
    $region40: #{tpu_custom_call.1} parent=1 // pred_region
      %726 = dma.done [#allocation4], 256
    $region41: #{tpu_custom_call.1} parent=1 // pred_fallthru
      _
    %727 = vsyncpa [#allocation3], 1
    %728 = vsyncpa [#allocation6], 1
    %729 = vsyncpa [#allocation4], 1

</llo_original>
